<compile_context>
chip_gen: v7x
topology: tpu7x:2x2x1
jax: 0.10.0
libtpu: 0.0.40
codegen_flags: <defaults>
</compile_context>

<pallas_src>
import math
import functools

import jax
import jax.numpy as jnp
from jax.experimental import pallas as pl
from jax.experimental.pallas import tpu as pltpu


# ----------------------------- small helpers ---------------------------------

def _round_up(x, m):
    return ((x + m - 1) // m) * m


def _cdiv(a, b):
    return (a + b - 1) // b


def _vmem_limits():
    """(tile-sizing budget, vmem_limit_bytes), derived from the chip's VMEM capacity."""
    cap = 64 * 1024 * 1024                     # conservative default (v7x per-core VMEM)
    try:
        info = pltpu.get_tpu_info()
        cap = int(getattr(info, "vmem_capacity_bytes", cap) or cap)
    except Exception:
        pass
    budget = max(8 << 20, (2 * cap) // 5)       # ~40% of VMEM for the pipelined blocks
    limit = max(32 << 20, min((3 * cap) // 4, cap - (8 << 20)))
    return budget, limit


def _pick_tile_m(lv, halo, cin_p, k_p, cout, n_batch, in_isz, out_isz, vmem_budget):
    """Pixel-tile (lane) size: multiple of 128, >= halo, <= padded image, VMEM-bounded."""
    lv128 = _round_up(max(lv, 1), 128)
    min_tm = _round_up(max(halo, 1), 128)       # two-block halo window must cover all taps
    # VMEM bytes that scale with the pixel (lane) axis:
    #   x blocks : 2 specs x 2 pipeline buffers x Cin_p        (MXU dtype)
    #   y block  : 2 pipeline buffers x Cout                   (out dtype)
    #   temps    : xcat (2*Cin_p) + patches (K_p) in MXU dtype, acc/epilogue ~2*Cout f32
    per_m = (4 * cin_p + 2 * cin_p + k_p) * in_isz + 2 * cout * out_isz + 2 * cout * 4
    fixed = 2 * cout * k_p * in_isz + 2 * cout * 4 + (1 << 20)   # weights/bias + slack
    cap = max(min_tm, (vmem_budget - fixed) // per_m)
    tm = max(min(lv128, (cap // 128) * 128), min_tm)
    # v7x has 2 TensorCores sharing the ("parallel","parallel") grid: keep >= 2 steps
    # only when the batch axis alone does not provide them (no splitting on v5e/v6e).
    if n_batch * _cdiv(lv, tm) < 2:
        half = (tm // 2 // 128) * 128
        if half >= min_tm and _cdiv(lv, half) >= 2:
            tm = half
    return tm


# ------------------------------- Pallas kernel --------------------------------

def _make_conv_kernel(tap_offsets, tm):
    def kernel(w_ref, b_ref, xa_ref, xb_ref, o_ref):
        """One (batch, pixel-tile) step: in-VMEM im2col + single MXU matmul + bias + ReLU.

        w_ref : (Cout, K_p)      reshaped conv weights, MXU dtype (VMEM-resident)
        b_ref : (Cout, 1)        bias, float32          (VMEM-resident)
        xa_ref: (1, Cin_p, tm)   pixel tile m of the flattened padded image
        xb_ref: (1, Cin_p, tm)   pixel tile m+1 (right halo)
        o_ref : (1, Cout, tm)    conv output tile (tm % 128 == 0 -> lane-dense stores)
        """
        xcat = jnp.concatenate([xa_ref[0], xb_ref[0]], axis=-1)        # (Cin_p, 2*tm)
        patches = jnp.concatenate(                                      # (K_p, tm)
            [xcat[:, off:off + tm] for off in tap_offsets], axis=0)     # static slices
        acc = jnp.dot(w_ref[...], patches,
                      preferred_element_type=jnp.float32)               # MXU, f32 accum
        o_ref[0] = jnp.maximum(acc + b_ref[...], 0.0).astype(o_ref.dtype)  # f32 epilogue
    return kernel


def conv2d_bias_relu_nchw(x, w_oihw, bias, *, mxu_dtype=jnp.bfloat16,
                          out_dtype=jnp.float32):
    """'same' Conv2d + bias + ReLU; NCHW in/out; in-kernel im2col, one matmul per tile."""
    N, Cin, H, W = x.shape
    Cout, _, KH, KW = w_oihw.shape
    pad_h, pad_w = KH // 2, KW // 2
    Hp, Wp = H + 2 * pad_h, W + 2 * pad_w
    out_H, out_W = Hp - KH + 1, Wp - KW + 1          # PyTorch stride-1 output size

    in_isz = jnp.dtype(mxu_dtype).itemsize
    out_isz = jnp.dtype(out_dtype).itemsize
    pack = 8 * (4 // in_isz)                          # sublane packing rows of MXU dtype
    Cin_p = _round_up(Cin, pack)                      # aligned in-kernel patch concat
    K_p = KH * KW * Cin_p

    # Virtual output: output rows laid out with the *padded* width Wp as row stride, so
    # every conv tap is a constant flat offset  off = dy*Wp + dx  into the padded image.
    # (Columns out_W..Wp-1 compute garbage and are cropped afterwards.)
    Lv = out_H * Wp
    halo = (KH - 1) * Wp + (KW - 1)                   # largest tap offset

    budget, vmem_limit = _vmem_limits()
    tm = _pick_tile_m(Lv, halo, Cin_p, K_p, Cout, N, in_isz, out_isz, budget)
    n_m = _cdiv(Lv, tm)
    Lv_pad = n_m * tm
    L_ext = (n_m + 1) * tm                            # extra tile = right halo of last tile

    # The only activation-side HBM tensor: zero-extended, flattened padded image.
    x_ext = jnp.pad(x.astype(mxu_dtype),
                    ((0, 0), (0, Cin_p - Cin), (pad_h, pad_h), (pad_w, pad_w)))
    x_ext = x_ext.reshape(N, Cin_p, Hp * Wp)
    x_ext = jnp.pad(x_ext, ((0, 0), (0, 0), (0, L_ext - Hp * Wp)))

    # Weights: (Cout, Cin, KH, KW) -> (Cout, K_p), tap-major / channel-minor rows.
    w_p = jnp.pad(w_oihw, ((0, 0), (0, Cin_p - Cin), (0, 0), (0, 0)))
    wmat = jnp.transpose(w_p, (0, 2, 3, 1)).reshape(Cout, K_p).astype(mxu_dtype)
    bias2 = bias.reshape(Cout, 1).astype(jnp.float32)

    tap_offsets = tuple(dy * Wp + dx for dy in range(KH) for dx in range(KW))
    kernel = _make_conv_kernel(tap_offsets, tm)

    cost = pl.CostEstimate(
        flops=2 * N * Cout * K_p * Lv_pad,
        transcendentals=0,
        bytes_accessed=2 * N * Cin_p * L_ext * in_isz + Cout * K_p * in_isz
                       + Cout * 4 + N * Cout * Lv_pad * out_isz)

    y = pl.pallas_call(
        kernel,
        out_shape=jax.ShapeDtypeStruct((N, Cout, Lv_pad), out_dtype),
        grid=(N, n_m),
        in_specs=[
            pl.BlockSpec((Cout, K_p), lambda n, m: (0, 0)),          # weights: resident
            pl.BlockSpec((Cout, 1), lambda n, m: (0, 0)),            # bias:    resident
            pl.BlockSpec((1, Cin_p, tm), lambda n, m: (n, 0, m)),       # tile m
            pl.BlockSpec((1, Cin_p, tm), lambda n, m: (n, 0, m + 1)),   # tile m+1 (halo)
        ],
        out_specs=pl.BlockSpec((1, Cout, tm), lambda n, m: (n, 0, m)),
        compiler_params=pltpu.CompilerParams(
            dimension_semantics=("parallel", "parallel"),
            vmem_limit_bytes=vmem_limit),
        cost_estimate=cost,
    )(wmat, bias2, x_ext, x_ext)

    # Crop the Wp-wide virtual rows back to the true (out_H, out_W) output.
    y = y[:, :, :Lv].reshape(N, Cout, out_H, Wp)[:, :, :, :out_W]
    return y


def _pixel_shuffle_nchw(y, r):
    """PixelShuffle(r), PyTorch channel ordering, NCHW in/out (single transpose)."""
    N, Co, H, W = y.shape
    C = Co // (r * r)
    y = y.reshape(N, C, r, r, H, W)
    y = jnp.transpose(y, (0, 1, 4, 2, 5, 3))   # (N, C, H, r, W, r)
    return y.reshape(N, C, H * r, W * r)


@functools.partial(jax.jit, static_argnames=("mxu_dtype",))
def upsample_block_forward(x_nchw, params, mxu_dtype=jnp.bfloat16):
    """Matches UpsampleBlock.forward.  x: (N, C, H, W) f32 -> (N, C, scale*H, scale*W)."""
    exact_f32 = jnp.dtype(mxu_dtype) == jnp.dtype(jnp.float32)
    x = x_nchw
    n_stages = len(params)
    for s, (w_oihw, b) in enumerate(params):
        C = x.shape[1]
        r = int(round(math.sqrt(w_oihw.shape[0] // C)))
        last = s == n_stages - 1
        # Intermediate stages store bf16 (next stage feeds the MXU in bf16 anyway);
        # the final stage keeps float32 module semantics.
        stage_out = jnp.float32 if (last or exact_f32) else jnp.bfloat16
        y = conv2d_bias_relu_nchw(x, w_oihw, b, mxu_dtype=mxu_dtype,
                                  out_dtype=stage_out)        # conv + bias + ReLU
        x = _pixel_shuffle_nchw(y, r)  # ReLU commutes with PixelShuffle (pure permutation)
    return x


# --------------------------- params / reference / test ------------------------

def make_upsample_params(num_channels, kernel_size, scale, key):
    """Deterministic params, PyTorch conv weight layout (Cout, Cin, KH, KW)."""
    if scale in (2, 4):
        n_stages, r = int(math.log(scale, 2)), 2
    elif scale == 3:
        n_stages, r = 1, 3
    else:
        raise NotImplementedError
    params = []
    for _ in range(n_stages):
        key, kw_, kb_ = jax.random.split(key, 3)
        cout = (r * r) * num_channels
        fan_in = num_channels * kernel_size * kernel_size
        bound = 1.0 / math.sqrt(fan_in)
        w = jax.random.uniform(kw_, (cout, num_channels, kernel_size, kernel_size),
                               jnp.float32, -bound, bound)
        b = jax.random.uniform(kb_, (cout,), jnp.float32, -bound, bound)
        params.append((w, b))
    return params


def _reference_forward(x_nchw, params, op_dtype=jnp.float32):
    """Pure-JAX reference (lax.conv, NCHW).  op_dtype rounds the matmul operands the
    same way the kernel does (bf16 rounding, f32 accumulation)."""
    x = x_nchw
    for w, b in params:
        C = x.shape[1]
        pad = w.shape[-1] // 2
        r = int(round(math.sqrt(w.shape[0] // C)))
        xq = x.astype(op_dtype).astype(jnp.float32)
        wq = w.astype(op_dtype).astype(jnp.float32)
        y = jax.lax.conv_general_dilated(
            xq, wq, window_strides=(1, 1), padding=((pad, pad), (pad, pad)),
            dimension_numbers=("NCHW", "OIHW", "NCHW"),
            precision=jax.lax.Precision.HIGHEST)
        y = y + b.reshape(1, -1, 1, 1)
        N, _, H, W = y.shape
        y = (y.reshape(N, C, r, r, H, W).transpose(0, 1, 4, 2, 5, 3)
              .reshape(N, C, H * r, W * r))
        x = jnp.maximum(y, 0.0)
    return x


if __name__ == "__main__":
    num_channels, kernel_size = 4, 3
    N, H, W = 2, 16, 16

    key = jax.random.PRNGKey(0)
    key, kx = jax.random.split(key)
    x = jax.random.normal(kx, (N, num_channels, H, W), jnp.float32)

    # (scale, MXU operand dtype, tolerance vs. same-operand-precision reference)
    cases = [
        (2, jnp.bfloat16, 2e-2),   # primary optimized path (bf16 MXU, f32 accum/epilogue)
        (2, jnp.float32, 1e-4),    # exact-f32 semantics check
        (4, jnp.float32, 1e-4),    # two-stage path
        (3, jnp.float32, 1e-4),    # r = 3 path
    ]
    for scale, mxu_dtype, tol in cases:
        params = make_upsample_params(num_channels, kernel_size, scale, key)
        out = jax.block_until_ready(
            upsample_block_forward(x, params, mxu_dtype=mxu_dtype))
        ref = jax.block_until_ready(
            _reference_forward(x, params, op_dtype=mxu_dtype))
        assert out.shape == (N, num_channels, H * scale, W * scale), (scale, out.shape)
        max_err = float(jnp.max(jnp.abs(out - ref)))
        assert jnp.allclose(out, ref, atol=tol, rtol=tol), (
            f"mismatch scale={scale} mxu_dtype={jnp.dtype(mxu_dtype).name} "
            f"max_err={max_err}")

    # Sanity: bf16 MXU operands + bf16 intermediate stage stay close to exact-f32 module.
    for scale in (2, 4):
        params = make_upsample_params(num_channels, kernel_size, scale, key)
        out_bf16 = jax.block_until_ready(
            upsample_block_forward(x, params, mxu_dtype=jnp.bfloat16))
        ref_f32 = jax.block_until_ready(
            _reference_forward(x, params, op_dtype=jnp.float32))
        assert jnp.allclose(out_bf16, ref_f32, atol=0.1, rtol=0.1), (
            f"bf16 drift too large at scale={scale}")

    print("KERNEL_OK")
</pallas_src>

<mosaic_0001>
module attributes {stable_mosaic.version = 11 : i64} {
  func.func @kernel(%arg0: i32, %arg1: i32, %arg2: memref<16x144xbf16, #tpu.memory_space<vmem>>, %arg3: memref<16x1xf32, #tpu.memory_space<vmem>>, %arg4: memref<1x16x384xbf16, #tpu.memory_space<vmem>>, %arg5: memref<1x16x384xbf16, #tpu.memory_space<vmem>>, %arg6: memref<1x16x384xf32, #tpu.memory_space<vmem>>) attributes {dimension_semantics = [#tpu.dimension_semantics<parallel>, #tpu.dimension_semantics<parallel>], iteration_bounds = array<i64: 2, 1>, scalar_prefetch = 0 : i64, scratch_operands = 0 : i64, tpu.core_type = #tpu.core_type<tc>, window_params = [{pipeline_mode = #tpu.pipeline_mode<synchronous>, transform_indices = @transform_0, window_bounds = array<i64: 16, 144>}, {pipeline_mode = #tpu.pipeline_mode<synchronous>, transform_indices = @transform_1, window_bounds = array<i64: 16, 1>}, {transform_indices = @transform_2, window_bounds = array<i64: 1, 16, 384>}, {transform_indices = @transform_3, window_bounds = array<i64: 1, 16, 384>}, {transform_indices = @transform_4, window_bounds = array<i64: 1, 16, 384>}]} {
    %c0 = arith.constant 0 : index
    %c0_0 = arith.constant 0 : index
    %c0_1 = arith.constant 0 : index
    %0 = vector.load %arg4[%c0, %c0_0, %c0_1] : memref<1x16x384xbf16, #tpu.memory_space<vmem>>, vector<1x16x384xbf16>
    %1 = vector.shape_cast %0 : vector<1x16x384xbf16> to vector<16x384xbf16>
    %c0_2 = arith.constant 0 : index
    %c0_3 = arith.constant 0 : index
    %c0_4 = arith.constant 0 : index
    %2 = vector.load %arg5[%c0_2, %c0_3, %c0_4] : memref<1x16x384xbf16, #tpu.memory_space<vmem>>, vector<1x16x384xbf16>
    %3 = vector.shape_cast %2 : vector<1x16x384xbf16> to vector<16x384xbf16>
    %4 = tpu.concatenate %1, %3 in 1 : vector<16x384xbf16>, vector<16x384xbf16> -> vector<16x768xbf16>
    %5 = vector.extract_strided_slice %4 {offsets = [0, 0], sizes = [16, 384], strides = [1, 1]} : vector<16x768xbf16> to vector<16x384xbf16>
    %6 = vector.extract_strided_slice %4 {offsets = [0, 1], sizes = [16, 384], strides = [1, 1]} : vector<16x768xbf16> to vector<16x384xbf16>
    %7 = vector.extract_strided_slice %4 {offsets = [0, 2], sizes = [16, 384], strides = [1, 1]} : vector<16x768xbf16> to vector<16x384xbf16>
    %8 = vector.extract_strided_slice %4 {offsets = [0, 18], sizes = [16, 384], strides = [1, 1]} : vector<16x768xbf16> to vector<16x384xbf16>
    %9 = vector.extract_strided_slice %4 {offsets = [0, 19], sizes = [16, 384], strides = [1, 1]} : vector<16x768xbf16> to vector<16x384xbf16>
    %10 = vector.extract_strided_slice %4 {offsets = [0, 20], sizes = [16, 384], strides = [1, 1]} : vector<16x768xbf16> to vector<16x384xbf16>
    %11 = vector.extract_strided_slice %4 {offsets = [0, 36], sizes = [16, 384], strides = [1, 1]} : vector<16x768xbf16> to vector<16x384xbf16>
    %12 = vector.extract_strided_slice %4 {offsets = [0, 37], sizes = [16, 384], strides = [1, 1]} : vector<16x768xbf16> to vector<16x384xbf16>
    %13 = vector.extract_strided_slice %4 {offsets = [0, 38], sizes = [16, 384], strides = [1, 1]} : vector<16x768xbf16> to vector<16x384xbf16>
    %14 = tpu.concatenate %5, %6, %7, %8, %9, %10, %11, %12, %13 in 0 : vector<16x384xbf16>, vector<16x384xbf16>, vector<16x384xbf16>, vector<16x384xbf16>, vector<16x384xbf16>, vector<16x384xbf16>, vector<16x384xbf16>, vector<16x384xbf16>, vector<16x384xbf16> -> vector<144x384xbf16>
    %c0_5 = arith.constant 0 : index
    %c0_6 = arith.constant 0 : index
    %15 = vector.load %arg2[%c0_5, %c0_6] : memref<16x144xbf16, #tpu.memory_space<vmem>>, vector<16x144xbf16>
    %cst = arith.constant dense<0.000000e+00> : vector<16x384xf32>
    %16 = tpu.matmul %15, %14, %cst {dimension_numbers = #tpu.dot_dimension_numbers<[1], [0], [0], [1], [0, 0, 1, 1], [], []>} : vector<16x144xbf16>, vector<144x384xbf16>, vector<16x384xf32> -> vector<16x384xf32>
    %c0_7 = arith.constant 0 : index
    %c0_8 = arith.constant 0 : index
    %17 = vector.load %arg3[%c0_7, %c0_8] : memref<16x1xf32, #tpu.memory_space<vmem>>, vector<16x1xf32>
    %18 = vector.broadcast %17 : vector<16x1xf32> to vector<16x384xf32>
    %19 = arith.addf %16, %18 : vector<16x384xf32>
    %cst_9 = arith.constant 0.000000e+00 : f32
    %20 = vector.broadcast %cst_9 : f32 to vector<16x384xf32>
    %21 = arith.maximumf %19, %20 : vector<16x384xf32>
    %c0_10 = arith.constant 0 : index
    %c0_11 = arith.constant 0 : index
    %c0_12 = arith.constant 0 : index
    %22 = vector.load %arg6[%c0_10, %c0_11, %c0_12] : memref<1x16x384xf32, #tpu.memory_space<vmem>>, vector<1x16x384xf32>
    %23 = vector.shape_cast %22 : vector<1x16x384xf32> to vector<16x384xf32>
    %24 = vector.shape_cast %21 : vector<16x384xf32> to vector<1x16x384xf32>
    tpu.vector_store %arg6[%c0_10, %c0_11, %c0_12], %24 {strides = array<i32>} : memref<1x16x384xf32, #tpu.memory_space<vmem>>, vector<1x16x384xf32>,
    return
  }
  func.func @transform_0(%arg0: i32, %arg1: i32) -> (i32, i32) {
    %c0_i32 = arith.constant 0 : i32
    %c0_i32_0 = arith.constant 0 : i32
    %c0_i32_1 = arith.constant 0 : i32
    return %c0_i32, %c0_i32_0 : i32, i32
  }
  func.func @transform_1(%arg0: i32, %arg1: i32) -> (i32, i32) {
    %c0_i32 = arith.constant 0 : i32
    %c0_i32_0 = arith.constant 0 : i32
    %c0_i32_1 = arith.constant 0 : i32
    return %c0_i32, %c0_i32_0 : i32, i32
  }
  func.func @transform_2(%arg0: i32, %arg1: i32) -> (i32, i32, i32) {
    %c0_i32 = arith.constant 0 : i32
    %c0_i32_0 = arith.constant 0 : i32
    return %arg0, %c0_i32, %arg1 : i32, i32, i32
  }
  func.func @transform_3(%arg0: i32, %arg1: i32) -> (i32, i32, i32) {
    %c1_i32 = arith.constant 1 : i32
    %0 = arith.addi %arg1, %c1_i32 : i32
    %c0_i32 = arith.constant 0 : i32
    %c0_i32_0 = arith.constant 0 : i32
    return %arg0, %c0_i32, %0 : i32, i32, i32
  }
  func.func @transform_4(%arg0: i32, %arg1: i32) -> (i32, i32, i32) {
    %c0_i32 = arith.constant 0 : i32
    %c0_i32_0 = arith.constant 0 : i32
    return %arg0, %c0_i32, %arg1 : i32, i32, i32
  }
}

</mosaic_0001>

<llo_original>
// kernel: upsample_block_forward.1
$region0: #{upsample_block_forward.1}
  #allocation0 [shape = 'u32[]', space=smem, size = 0x4, offset = 0x4, fixed_abs, tag = 'smem constant byte address 0x4 - core index']
  #allocation1 [shape = 'u32[144,128]{1,0:T(1,128)}', space=vmem, size = 0x12000, scoped, tag = 'internal scratch']
  %s0 = inlined_call_operand.vmem [shape: bf16[16,144], index: 0, kind: input, shape index: {}]
  %s1 = inlined_call_operand.vmem [shape: f32[16,1], index: 1, kind: input, shape index: {}]
  %s2 = inlined_call_operand.vmem [shape: bf16[2,16,768], index: 2, kind: input, shape index: {}, may-alias: {2,3}]
  %s3 = inlined_call_operand.vmem [shape: bf16[2,16,768], index: 3, kind: input, shape index: {}, may-alias: {2,3}]
  %s4 = inlined_call_operand.vmem [shape: f32[2,16,384], index: 4, kind: output, shape index: {}]
  %s5 = sld [smem:[#allocation0]]
  $region101: #{upsample_block_forward.1} parent=0
    _
  %s7 = ssub.s32 1, %s5
  %s8 = scalar_select 0, %s7, %s5
  $region1: #{upsample_block_forward.1} parent=0
    #allocation2 [shape = 'u8[24576]{0}', space=vmem, size = 0x6000, scoped, tag = 'input window, operand 2']
    #allocation3 [shape = 'u8[24576]{0}', space=vmem, size = 0x6000, scoped, tag = 'input window, operand 3']
    loop: start=0, step=1, limit=4
    $region2: #{upsample_block_forward.1} parent=1 // loop_pre_header
      _
    $region3: #{upsample_block_forward.1} parent=1 // loop_header
      %s10 = sphi 0, %s14
      %p11 = scmp.ge.s32.totalorder %s10, 4
      %s17 = sphi 0, %s29
      %s18 = sphi 0, %s25
      %s19 = sphi 0, %s17
      %s20 = sphi 0, %s18
      %s21 = sphi 0, %s19
      %s22 = sphi 0, %s20
      %s30 = sphi 0, %s30
      %s32 = sphi 0, %s30
      %s33 = sphi 0, %s32
      %s47 = sphi 0, %s33
      %s51 = sphi 0, %s51
      %s53 = sphi 0, %s51
      %s54 = sphi 0, %s53
      %s68 = sphi 0, %s54
      %s76 = sphi 0, %s78
      %s79 = sphi 0, %s76
      %s80 = sphi 0, %s79
      %s96 = sphi 0, %s80
      %s106 = sphi 0, %s108
      %s109 = sphi 0, %s106
      %s110 = sphi 0, %s109
      %s126 = sphi 0, %s110
      %s134 = sphi 0, %s136
      %s137 = sphi 0, %s134
      %s138 = sphi 0, %s137
      %s154 = sphi 0, %s138
    $region4: #{upsample_block_forward.1} parent=1 // loop_header_branch
      %13 = sbr.rel (%p11) target = $region8
    $region5: #{upsample_block_forward.1} parent=1 // loop_body
      %s15 = ssub.s32 %s10, 1
      %s16 = ssub.s32 %s10, 2
      %s23 = sadd.s32 1, %s18
      %p24 = scmp.ge.s32.totalorder %s23, 1
      %s25 = scalar_select %p24, 0, %s23
      %s26 = sadd.s32 1, %s17
      %s27 = scalar_select %p24, %s26, %s17
      %p28 = scmp.ge.s32.totalorder %s27, 2
      %s29 = scalar_select %p28, 0, %s27
      %s31 = sadd.s32 %s30, 1
      %p34 = scmp.eq.s32.totalorder %s10, 1
      %p35 = scmp.ne.s32.totalorder %s30, %s32
      %p36 = scmp.eq.s32.totalorder %s10, 0
      %p37 = por %p35, %p36
      %p38 = scmp.ne.s32.totalorder %s30, %s32
      %p39 = scmp.eq.s32.totalorder %s15, 1
      %p40 = por %p38, %p39
      %p41 = scmp.ne.s32.totalorder %s32, %s33
      %p42 = scmp.eq.s32.totalorder %s15, 0
      %p43 = por %p41, %p42
      %p44 = scmp.ne.s32.totalorder %s32, %s33
      %p45 = scmp.eq.s32.totalorder %s16, 1
      %p46 = por %p44, %p45
      %p48 = scmp.ne.s32.totalorder %s33, %s47
      %p49 = scmp.eq.s32.totalorder %s16, 0
      %p50 = por %p48, %p49
      %s52 = sadd.s32 %s51, 1
      %p55 = scmp.eq.s32.totalorder %s10, 1
      %p56 = scmp.ne.s32.totalorder %s51, %s53
      %p57 = scmp.eq.s32.totalorder %s10, 0
      %p58 = por %p56, %p57
      %p59 = scmp.ne.s32.totalorder %s51, %s53
      %p60 = scmp.eq.s32.totalorder %s15, 1
      %p61 = por %p59, %p60
      %p62 = scmp.ne.s32.totalorder %s53, %s54
      %p63 = scmp.eq.s32.totalorder %s15, 0
      %p64 = por %p62, %p63
      %p65 = scmp.ne.s32.totalorder %s53, %s54
      %p66 = scmp.eq.s32.totalorder %s16, 1
      %p67 = por %p65, %p66
      %p69 = scmp.ne.s32.totalorder %s54, %s68
      %p70 = scmp.eq.s32.totalorder %s16, 0
      %p71 = por %p69, %p70
      %s72 = ssub.s32 %s17, %s29
      %s73 = ssub.s32 %s18, %s25
      %s74 = sor.u32 %s72, %s73
      %p75 = scmp.eq.s32.totalorder %s74, 0
      %s77 = sadd.s32 %s76, 1
      %s78 = scalar_select %p75, %s76, %s77
      %p81 = pneg %p75
      %p82 = scmp.eq.s32.totalorder %s10, 1
      %p83 = por %p81, %p82
      %p84 = scmp.ne.s32.totalorder %s76, %s79
      %p85 = scmp.eq.s32.totalorder %s10, 0
      %p86 = por %p84, %p85
      %p87 = scmp.ne.s32.totalorder %s76, %s79
      %p88 = scmp.eq.s32.totalorder %s15, 1
      %p89 = por %p87, %p88
      %p90 = scmp.ne.s32.totalorder %s79, %s80
      %p91 = scmp.eq.s32.totalorder %s15, 0
      %p92 = por %p90, %p91
      %p93 = scmp.ne.s32.totalorder %s79, %s80
      %p94 = scmp.eq.s32.totalorder %s16, 1
      %p95 = por %p93, %p94
      %p97 = scmp.ne.s32.totalorder %s80, %s96
      %p98 = scmp.eq.s32.totalorder %s16, 0
      %p99 = por %p97, %p98
      %s100 = sadd.s32 %s18, 1
      %s101 = sadd.s32 %s25, 1
      %s102 = ssub.s32 %s17, %s29
      %s103 = ssub.s32 %s100, %s101
      %s104 = sor.u32 %s102, %s103
      %p105 = scmp.eq.s32.totalorder %s104, 0
      %s107 = sadd.s32 %s106, 1
      %s108 = scalar_select %p105, %s106, %s107
      %p111 = pneg %p105
      %p112 = scmp.eq.s32.totalorder %s10, 1
      %p113 = por %p111, %p112
      %p114 = scmp.ne.s32.totalorder %s106, %s109
      %p115 = scmp.eq.s32.totalorder %s10, 0
      %p116 = por %p114, %p115
      %p117 = scmp.ne.s32.totalorder %s106, %s109
      %p118 = scmp.eq.s32.totalorder %s15, 1
      %p119 = por %p117, %p118
      %p120 = scmp.ne.s32.totalorder %s109, %s110
      %p121 = scmp.eq.s32.totalorder %s15, 0
      %p122 = por %p120, %p121
      %p123 = scmp.ne.s32.totalorder %s109, %s110
      %p124 = scmp.eq.s32.totalorder %s16, 1
      %p125 = por %p123, %p124
      %p127 = scmp.ne.s32.totalorder %s110, %s126
      %p128 = scmp.eq.s32.totalorder %s16, 0
      %p129 = por %p127, %p128
      %s130 = ssub.s32 %s17, %s29
      %s131 = ssub.s32 %s18, %s25
      %s132 = sor.u32 %s130, %s131
      %p133 = scmp.eq.s32.totalorder %s132, 0
      %s135 = sadd.s32 %s134, 1
      %s136 = scalar_select %p133, %s134, %s135
      %p139 = pneg %p133
      %p140 = scmp.eq.s32.totalorder %s10, 1
      %p141 = por %p139, %p140
      %p142 = scmp.ne.s32.totalorder %s134, %s137
      %p143 = scmp.eq.s32.totalorder %s10, 0
      %p144 = por %p142, %p143
      %p145 = scmp.ne.s32.totalorder %s134, %s137
      %p146 = scmp.eq.s32.totalorder %s15, 1
      %p147 = por %p145, %p146
      %p148 = scmp.ne.s32.totalorder %s137, %s138
      %p149 = scmp.eq.s32.totalorder %s15, 0
      %p150 = por %p148, %p149
      %p151 = scmp.ne.s32.totalorder %s137, %s138
      %p152 = scmp.eq.s32.totalorder %s16, 1
      %p153 = por %p151, %p152
      %p155 = scmp.ne.s32.totalorder %s138, %s154
      %p156 = scmp.eq.s32.totalorder %s16, 0
      %p157 = por %p155, %p156
      %p158 = scmp.le.s32.totalorder 1, %s10
      %p159 = scmp.lt.s32.totalorder %s10, 3
      %p160 = pnand %p158, %p159
      %p161 = pneg %p160
      // Predicated region
      $region9: #{upsample_block_forward.1} parent=5 // pred_check
        _
      $region10: #{upsample_block_forward.1} parent=5 // pred_check_branch
        %163 = sbr.rel (%p160) target = $region12
      $region11: #{upsample_block_forward.1} parent=5 // pred_region
        %s164 = ssub.s32 %s10, 1
        // Predicated region
        $region13: #{upsample_block_forward.1} parent=11 // pred_check
          %p165 = pneg %p43
        $region14: #{upsample_block_forward.1} parent=11 // pred_check_branch
          %167 = sbr.rel (%p165) target = $region16
        $region15: #{upsample_block_forward.1} parent=11 // pred_region
          _
        $region16: #{upsample_block_forward.1} parent=11 // pred_fallthru
          _
        // Predicated region
        $region17: #{upsample_block_forward.1} parent=11 // pred_check
          %p168 = pneg %p64
        $region18: #{upsample_block_forward.1} parent=11 // pred_check_branch
          %170 = sbr.rel (%p168) target = $region20
        $region19: #{upsample_block_forward.1} parent=11 // pred_region
          _
        $region20: #{upsample_block_forward.1} parent=11 // pred_fallthru
          _
      $region12: #{upsample_block_forward.1} parent=5 // pred_fallthru
        _
      %p171 = scmp.lt.s32.totalorder %s10, 2
      // Predicated region
      $region21: #{upsample_block_forward.1} parent=5 // pred_check
        %p172 = pneg %p171
      $region22: #{upsample_block_forward.1} parent=5 // pred_check_branch
        %174 = sbr.rel (%p172) target = $region24
      $region23: #{upsample_block_forward.1} parent=5 // pred_region
        // Predicated region
        $region25: #{upsample_block_forward.1} parent=23 // pred_check
          %p175 = pneg %p86
        $region26: #{upsample_block_forward.1} parent=23 // pred_check_branch
          %177 = sbr.rel (%p175) target = $region28
        $region27: #{upsample_block_forward.1} parent=23 // pred_region
          %s178 = sand.u32 %s76, 1
          %s179 = sand.u32 %s76, 1
          %s180 = smul.addr %s179, 24
          %s181 = scalar_lea.vmem [#allocation2], %s180
          %s182 = smul.u32 3, %s18
          %s183 = smul.addr %s17, 12
          %s184 = sadd.s32 %s182, %s183
          %s185 = smul.addr %s184, 4
          %s186 = scalar_lea.vmem %s2, %s185
          // Predicated region
          $region29: #{upsample_block_forward.1} parent=27 // pred_check
            _
          $region30: #{upsample_block_forward.1} parent=27 // pred_check_branch
            %188 = sbr.rel (0) target = $region32
          $region31: #{upsample_block_forward.1} parent=27 // pred_region
            // Predicated region
            $region33: #{upsample_block_forward.1} parent=31 // pred_check
              _
            $region34: #{upsample_block_forward.1} parent=31 // pred_check_branch
              %190 = sbr.rel (0) target = $region36
            $region35: #{upsample_block_forward.1} parent=31 // pred_region
              %s191 = scalar_lea.vmem %s186, 8
              %s192 = scalar_lea.vmem %s181, 8 [#allocation2]
              loop: start=0, step=1, limit=1
              $region37: #{upsample_block_forward.1} parent=35 // loop_pre_header
                _
              $region38: #{upsample_block_forward.1} parent=35 // loop_header
                %s194 = sphi 0, %s198
                %p195 = scmp.ge.s32.totalorder %s194, 1
                %s199 = sphi %s186, %s186
                %s200 = sphi %s181, %s181
              $region39: #{upsample_block_forward.1} parent=35 // loop_header_branch
                %197 = sbr.rel (%p195) target = $region43
              $region40: #{upsample_block_forward.1} parent=35 // loop_body
                %v201 = vld [vmem:[%s199] sm:$0xff]
                %202 = vst [vmem:[%s200] sm:$0xff] %v201
                %v203 = vld [vmem:[%s199 + $0x18] sm:$0xff]
                %204 = vst [vmem:[%s200 + $0xc] sm:$0xff] %v203
              $region41: #{upsample_block_forward.1} parent=35 // loop_footer
                %s198 = sadd.s32 1, %s194
              $region42: #{upsample_block_forward.1} parent=35 // loop_footer_branch
                %193 = sbr.rel target = $region38
              $region43: #{upsample_block_forward.1} parent=35 // loop_exit
                _
              loop: start=0, step=1, limit=1
              $region44: #{upsample_block_forward.1} parent=35 // loop_pre_header
                _
              $region45: #{upsample_block_forward.1} parent=35 // loop_header
                %s207 = sphi 0, %s211
                %p208 = scmp.ge.s32.totalorder %s207, 1
                %s212 = sphi %s191, %s191
                %s213 = sphi %s192, %s192
              $region46: #{upsample_block_forward.1} parent=35 // loop_header_branch
                %210 = sbr.rel (%p208) target = $region50
              $region47: #{upsample_block_forward.1} parent=35 // loop_body
                %v214 = vld [vmem:[%s212] sm:$0xf]
                %215 = vst [vmem:[%s213] sm:$0xf] %v214
                %v216 = vld [vmem:[%s212 + $0x18] sm:$0xf]
                %217 = vst [vmem:[%s213 + $0xc] sm:$0xf] %v216
              $region48: #{upsample_block_forward.1} parent=35 // loop_footer
                %s211 = sadd.s32 1, %s207
              $region49: #{upsample_block_forward.1} parent=35 // loop_footer_branch
                %206 = sbr.rel target = $region45
              $region50: #{upsample_block_forward.1} parent=35 // loop_exit
                _
            $region36: #{upsample_block_forward.1} parent=31 // pred_fallthru
              _
          $region32: #{upsample_block_forward.1} parent=27 // pred_fallthru
            _
          %218 = vnop
        $region28: #{upsample_block_forward.1} parent=23 // pred_fallthru
          _
        // Predicated region
        $region51: #{upsample_block_forward.1} parent=23 // pred_check
          %p219 = pneg %p116
        $region52: #{upsample_block_forward.1} parent=23 // pred_check_branch
          %221 = sbr.rel (%p219) target = $region54
        $region53: #{upsample_block_forward.1} parent=23 // pred_region
          %s222 = sand.u32 %s106, 1
          %s223 = sand.u32 %s106, 1
          %s224 = smul.addr %s223, 24
          %s225 = scalar_lea.vmem [#allocation3], %s224
          %s226 = sadd.s32 %s18, 1
          %s227 = smul.u32 3, %s226
          %s228 = smul.addr %s17, 12
          %s229 = sadd.s32 %s227, %s228
          %s230 = smul.addr %s229, 4
          %s231 = scalar_lea.vmem %s3, %s230
          // Predicated region
          $region55: #{upsample_block_forward.1} parent=53 // pred_check
            _
          $region56: #{upsample_block_forward.1} parent=53 // pred_check_branch
            %233 = sbr.rel (0) target = $region58
          $region57: #{upsample_block_forward.1} parent=53 // pred_region
            // Predicated region
            $region59: #{upsample_block_forward.1} parent=57 // pred_check
              _
            $region60: #{upsample_block_forward.1} parent=57 // pred_check_branch
              %235 = sbr.rel (0) target = $region62
            $region61: #{upsample_block_forward.1} parent=57 // pred_region
              %s236 = scalar_lea.vmem %s231, 8
              %s237 = scalar_lea.vmem %s225, 8 [#allocation3]
              loop: start=0, step=1, limit=1
              $region63: #{upsample_block_forward.1} parent=61 // loop_pre_header
                _
              $region64: #{upsample_block_forward.1} parent=61 // loop_header
                %s239 = sphi 0, %s243
                %p240 = scmp.ge.s32.totalorder %s239, 1
                %s244 = sphi %s231, %s231
                %s245 = sphi %s225, %s225
              $region65: #{upsample_block_forward.1} parent=61 // loop_header_branch
                %242 = sbr.rel (%p240) target = $region69
              $region66: #{upsample_block_forward.1} parent=61 // loop_body
                %v246 = vld [vmem:[%s244] sm:$0xff]
                %247 = vst [vmem:[%s245] sm:$0xff] %v246
                %v248 = vld [vmem:[%s244 + $0x18] sm:$0xff]
                %249 = vst [vmem:[%s245 + $0xc] sm:$0xff] %v248
              $region67: #{upsample_block_forward.1} parent=61 // loop_footer
                %s243 = sadd.s32 1, %s239
              $region68: #{upsample_block_forward.1} parent=61 // loop_footer_branch
                %238 = sbr.rel target = $region64
              $region69: #{upsample_block_forward.1} parent=61 // loop_exit
                _
              loop: start=0, step=1, limit=1
              $region70: #{upsample_block_forward.1} parent=61 // loop_pre_header
                _
              $region71: #{upsample_block_forward.1} parent=61 // loop_header
                %s252 = sphi 0, %s256
                %p253 = scmp.ge.s32.totalorder %s252, 1
                %s257 = sphi %s236, %s236
                %s258 = sphi %s237, %s237
              $region72: #{upsample_block_forward.1} parent=61 // loop_header_branch
                %255 = sbr.rel (%p253) target = $region76
              $region73: #{upsample_block_forward.1} parent=61 // loop_body
                %v259 = vld [vmem:[%s257] sm:$0xf]
                %260 = vst [vmem:[%s258] sm:$0xf] %v259
                %v261 = vld [vmem:[%s257 + $0x18] sm:$0xf]
                %262 = vst [vmem:[%s258 + $0xc] sm:$0xf] %v261
              $region74: #{upsample_block_forward.1} parent=61 // loop_footer
                %s256 = sadd.s32 1, %s252
              $region75: #{upsample_block_forward.1} parent=61 // loop_footer_branch
                %251 = sbr.rel target = $region71
              $region76: #{upsample_block_forward.1} parent=61 // loop_exit
                _
            $region62: #{upsample_block_forward.1} parent=57 // pred_fallthru
              _
          $region58: #{upsample_block_forward.1} parent=53 // pred_fallthru
            _
          %263 = vnop
        $region54: #{upsample_block_forward.1} parent=23 // pred_fallthru
          _
      $region24: #{upsample_block_forward.1} parent=5 // pred_fallthru
        _
      %p264 = scmp.le.s32.totalorder 1, %s10
      %p265 = scmp.lt.s32.totalorder %s10, 3
      %p266 = pnand %p264, %p265
      %p267 = pneg %p266
      // Predicated region
      $region77: #{upsample_block_forward.1} parent=5 // pred_check
        _
      $region78: #{upsample_block_forward.1} parent=5 // pred_check_branch
        %269 = sbr.rel (%p266) target = $region80
      $region79: #{upsample_block_forward.1} parent=5 // pred_region
        %s270 = ssub.s32 %s10, 1
        %s271 = sand.u32 %s79, 1
        %s272 = sand.u32 %s79, 1
        %s273 = smul.addr %s272, 24
        %s274 = scalar_lea.vmem [#allocation2], %s273
        // Predicated region
        $region81: #{upsample_block_forward.1} parent=79 // pred_check
          %p275 = pneg %p92
        $region82: #{upsample_block_forward.1} parent=79 // pred_check_branch
          %277 = sbr.rel (%p275) target = $region84
        $region83: #{upsample_block_forward.1} parent=79 // pred_region
          _
        $region84: #{upsample_block_forward.1} parent=79 // pred_fallthru
          _
        %s278 = sand.u32 %s109, 1
        %s279 = sand.u32 %s109, 1
        %s280 = smul.addr %s279, 24
        %s281 = scalar_lea.vmem [#allocation3], %s280
        // Predicated region
        $region85: #{upsample_block_forward.1} parent=79 // pred_check
          %p282 = pneg %p122
        $region86: #{upsample_block_forward.1} parent=79 // pred_check_branch
          %284 = sbr.rel (%p282) target = $region88
        $region87: #{upsample_block_forward.1} parent=79 // pred_region
          _
        $region88: #{upsample_block_forward.1} parent=79 // pred_fallthru
          _
        %p285 = pneg %p43
        %p286 = pneg %p40
        %p287 = pneg %p64
        %p288 = pneg %p61
        %s289 = sand.u32 %s79, 1
        %s290 = sand.u32 %s79, 1
        %s291 = smul.addr %s290, 24
        %s292 = scalar_lea.vmem [#allocation2], %s291
        %p293 = pneg %p92
        %p294 = pneg %p89
        %s295 = sand.u32 %s109, 1
        %s296 = sand.u32 %s109, 1
        %s297 = smul.addr %s296, 24
        %s298 = scalar_lea.vmem [#allocation3], %s297
        %p299 = pneg %p122
        %p300 = pneg %p119
        %p301 = pneg %p150
        %p302 = pneg %p147
        %s303 = smul.u32 3, %s20
        %p304 = scmp.lt.s32.totalorder %s19, 1
        %s305 = scalar_select %p304, %s19, 1
        %p306 = scmp.lt.s32.totalorder %s303, 2
        %s307 = scalar_select %p306, %s303, 2
        %s308 = smul.addr %s305, 6
        %s309 = sadd.s32 %s307, %s308
        %s310 = smul.addr %s309, 8
        %s311 = scalar_lea.vmem %s4, %s310
        %s312 = smul.u32 3, %s20
        %s313 = sadd.s32 %s20, 1
        %s314 = smul.u32 3, %s313
        %s315 = smul.u32 3, %s20
        %p316 = scmp.lt.s32.totalorder %s19, 1
        %s317 = scalar_select %p316, %s19, 1
        %p318 = scmp.lt.s32.totalorder %s315, 2
        %s319 = scalar_select %p318, %s315, 2
        %s320 = smul.addr %s317, 6
        %s321 = sadd.s32 %s319, %s320
        %s322 = smul.addr %s321, 8
        %s323 = scalar_lea.vmem %s4, %s322
        %s324 = smul.u32 3, %s20
        %v326 = vld [vmem:[%s274] sm:$0xff]
        %v327 = vld [vmem:[%s274 + $0x8] sm:$0xf]
        %v328 = vld [vmem:[%s274 + $0xc] sm:$0xff]
        %v329 = vld [vmem:[%s274 + $0x14] sm:$0xf]
        %v330 = vld [vmem:[%s281] sm:$0xff]
        %v331 = vld [vmem:[%s281 + $0xc] sm:$0xff]
        %v336 = vunpack.c.l.b16 %v326
        %v337 = vunpack.c.h.b16 %v326
        %v338 = vunpack.c.l.b16 %v327
        %v339 = vunpack.c.l.b16 %v328
        %v340 = vunpack.c.h.b16 %v328
        %v341 = vunpack.c.l.b16 %v329
        %v342 = vpack.c.b16 %v339, %v336
        %v343 = vpack.c.b16 %v340, %v337
        %v344 = vpack.c.b16 %v341, %v338
        %v350 = vunpack.c.l.b16 %v330
        %v351 = vunpack.c.l.b16 %v331
        %v352 = vpack.c.b16 %v351, %v350
        %353 = vrot.lane.b32.xlu0 %v342, 127
        %v354 = vpop.permute.xlu0 %353
        %355 = vrot.lane.b32.xlu0 %v343, 127
        %v356 = vpop.permute.xlu0 %355
        %357 = vrot.lane.b32.xlu0 %v344, 127
        %v358 = vpop.permute.xlu0 %357
        %359 = vrot.lane.b32.xlu0 %v352, 127
        %v360 = vpop.permute.xlu0 %359
        %vm361 = vcmask 1039360
        %v362 = vsel %vm361, %v354, %v356
        %v363 = vsel %vm361, %v356, %v358
        %v364 = vsel %vm361, %v358, %v360
        %368 = vrot.lane.b32.xlu0 %v342, 126
        %v369 = vpop.permute.xlu0 %368
        %370 = vrot.lane.b32.xlu0 %v343, 126
        %v371 = vpop.permute.xlu0 %370
        %372 = vrot.lane.b32.xlu0 %v344, 126
        %v373 = vpop.permute.xlu0 %372
        %374 = vrot.lane.b32.xlu0 %v352, 126
        %v375 = vpop.permute.xlu0 %374
        %vm376 = vcmask 1031168
        %v377 = vsel %vm376, %v369, %v371
        %v378 = vsel %vm376, %v371, %v373
        %v379 = vsel %vm376, %v373, %v375
        %383 = vrot.lane.b32.xlu0 %v342, 110
        %v384 = vpop.permute.xlu0 %383
        %385 = vrot.lane.b32.xlu0 %v343, 110
        %v386 = vpop.permute.xlu0 %385
        %387 = vrot.lane.b32.xlu0 %v344, 110
        %v388 = vpop.permute.xlu0 %387
        %389 = vrot.lane.b32.xlu0 %v352, 110
        %v390 = vpop.permute.xlu0 %389
        %vm391 = vcmask 900096
        %v392 = vsel %vm391, %v384, %v386
        %v393 = vsel %vm391, %v386, %v388
        %v394 = vsel %vm391, %v388, %v390
        %398 = vrot.lane.b32.xlu0 %v342, 109
        %v399 = vpop.permute.xlu0 %398
        %400 = vrot.lane.b32.xlu0 %v343, 109
        %v401 = vpop.permute.xlu0 %400
        %402 = vrot.lane.b32.xlu0 %v344, 109
        %v403 = vpop.permute.xlu0 %402
        %404 = vrot.lane.b32.xlu0 %v352, 109
        %v405 = vpop.permute.xlu0 %404
        %vm406 = vcmask 891904
        %v407 = vsel %vm406, %v399, %v401
        %v408 = vsel %vm406, %v401, %v403
        %v409 = vsel %vm406, %v403, %v405
        %413 = vrot.lane.b32.xlu0 %v342, 108
        %v414 = vpop.permute.xlu0 %413
        %415 = vrot.lane.b32.xlu0 %v343, 108
        %v416 = vpop.permute.xlu0 %415
        %417 = vrot.lane.b32.xlu0 %v344, 108
        %v418 = vpop.permute.xlu0 %417
        %419 = vrot.lane.b32.xlu0 %v352, 108
        %v420 = vpop.permute.xlu0 %419
        %vm421 = vcmask 883712
        %v422 = vsel %vm421, %v414, %v416
        %v423 = vsel %vm421, %v416, %v418
        %v424 = vsel %vm421, %v418, %v420
        %428 = vrot.lane.b32.xlu0 %v342, 92
        %v429 = vpop.permute.xlu0 %428
        %430 = vrot.lane.b32.xlu0 %v343, 92
        %v431 = vpop.permute.xlu0 %430
        %432 = vrot.lane.b32.xlu0 %v344, 92
        %v433 = vpop.permute.xlu0 %432
        %434 = vrot.lane.b32.xlu0 %v352, 92
        %v435 = vpop.permute.xlu0 %434
        %vm436 = vcmask 752640
        %v437 = vsel %vm436, %v429, %v431
        %v438 = vsel %vm436, %v431, %v433
        %v439 = vsel %vm436, %v433, %v435
        %443 = vrot.lane.b32.xlu0 %v342, 91
        %v444 = vpop.permute.xlu0 %443
        %445 = vrot.lane.b32.xlu0 %v343, 91
        %v446 = vpop.permute.xlu0 %445
        %447 = vrot.lane.b32.xlu0 %v344, 91
        %v448 = vpop.permute.xlu0 %447
        %449 = vrot.lane.b32.xlu0 %v352, 91
        %v450 = vpop.permute.xlu0 %449
        %vm451 = vcmask 744448
        %v452 = vsel %vm451, %v444, %v446
        %v453 = vsel %vm451, %v446, %v448
        %v454 = vsel %vm451, %v448, %v450
        %458 = vrot.lane.b32.xlu0 %v342, 90
        %v459 = vpop.permute.xlu0 %458
        %460 = vrot.lane.b32.xlu0 %v343, 90
        %v461 = vpop.permute.xlu0 %460
        %462 = vrot.lane.b32.xlu0 %v344, 90
        %v463 = vpop.permute.xlu0 %462
        %464 = vrot.lane.b32.xlu0 %v352, 90
        %v465 = vpop.permute.xlu0 %464
        %vm466 = vcmask 736256
        %v467 = vsel %vm466, %v459, %v461
        %v468 = vsel %vm466, %v461, %v463
        %v469 = vsel %vm466, %v463, %v465
        %v473 = vld [vmem:[%s0] sm:$0xff]
        %v474 = vld [vmem:[%s0 + $0x8] sm:$0xff]
        %v475 = vld [vmem:[%s1] sm:$0xff]
        %v476 = vld [vmem:[%s1 + $0x8] sm:$0xff]
        %478 = vset.pattern.permute.xlu0 0
        %479 = vperm.xlu0 %478, %v475
        %v480 = vpop.permute.xlu0 %479
        %483 = vset.pattern.permute.xlu0 0
        %484 = vperm.xlu0 %483, %v476
        %v485 = vpop.permute.xlu0 %484
        %v489 = vunpack.c.l.b16 %v473
        %v490 = vunpack.c.h.b16 %v473
        %v491 = vunpack.c.l.b16 %v474
        %v492 = vunpack.c.h.b16 %v474
        %v493 = vpack.c.b16 %v491, %v489
        %v494 = vpack.c.b16 %v492, %v490
        %vm496 = vcmask 130048
        %v498 = vsel %vm496, %v494, 0
        %500 = vmatprep.subr.bf16.mxu0 %v343
        %501 = vmatpush1.bf16.msra.mxu0 %v342
        %502 = vmatprep.subr.bf16.mxu0 %v363
        %503 = vmatpush1.bf16.msra.mxu0 %v362
        %504 = vmatprep.subr.bf16.mxu0 %v378
        %505 = vmatpush1.bf16.msra.mxu0 %v377
        %506 = vmatprep.subr.bf16.mxu0 %v393
        %507 = vmatpush1.bf16.msra.mxu0 %v392
        %508 = vmatprep.subr.bf16.mxu0 %v408
        %509 = vmatpush1.bf16.msra.mxu0 %v407
        %510 = vmatprep.subr.bf16.mxu0 %v423
        %511 = vmatpush1.bf16.msra.mxu0 %v422
        %512 = vmatprep.subr.bf16.mxu0 %v438
        %513 = vmatpush1.bf16.msra.mxu0 %v437
        %514 = vmatprep.subr.bf16.mxu0 %v453
        %515 = vmatpush1.bf16.msra.mxu0 %v452
        %516 = vmatprep.subr.bf16.mxu0 %v468
        %517 = vmatpush1.bf16.msra.mxu0 %v467
        %518 = vmatprep.subr.bf16.mxu0 0
        %519 = vmatpush1.bf16.msra.mxu0 0
        %520 = vmatprep.subr.bf16.mxu0 0
        %521 = vmatpush1.bf16.msra.mxu0 0
        %522 = vmatprep.subr.bf16.mxu0 0
        %523 = vmatpush1.bf16.msra.mxu0 0
        %524 = vmatprep.subr.bf16.mxu0 0
        %525 = vmatpush1.bf16.msra.mxu0 0
        %526 = vmatprep.subr.bf16.mxu0 0
        %527 = vmatpush1.bf16.msra.mxu0 0
        %528 = vmatprep.subr.bf16.mxu0 0
        %529 = vmatpush1.bf16.msra.mxu0 0
        %530 = vmatprep.subr.bf16.mxu0 0
        %531 = vmatpush1.bf16.msra.mxu0 0
        %532 = vmatprep.mubr.bf16.mxu0 %v498
        %533 = vmatmul.mubr.bf16.gmra.mrb[0].mxu0 %v493
        %v534 = vpop.f32.mrb[0].mxu0
        %v535 = vadd.f32 %v480, %v534
        %v536 = vpop.f32.mrb[0].mxu0
        %v537 = vadd.f32 %v480, %v536
        %v538 = vpop.f32.mrb[0].mxu0
        %v539 = vadd.f32 %v485, %v538
        %v540 = vpop.f32.mrb[0].mxu0
        %v541 = vadd.f32 %v485, %v540
        %542 = vdwg.mxu0
        %543 = vmatprep.subr.bf16.mxu0 0
        %544 = vmatpush1.bf16.msra.mxu0 %v344
        %545 = vmatprep.subr.bf16.mxu0 0
        %546 = vmatpush1.bf16.msra.mxu0 %v364
        %547 = vmatprep.subr.bf16.mxu0 0
        %548 = vmatpush1.bf16.msra.mxu0 %v379
        %549 = vmatprep.subr.bf16.mxu0 0
        %550 = vmatpush1.bf16.msra.mxu0 %v394
        %551 = vmatprep.subr.bf16.mxu0 0
        %552 = vmatpush1.bf16.msra.mxu0 %v409
        %553 = vmatprep.subr.bf16.mxu0 0
        %554 = vmatpush1.bf16.msra.mxu0 %v424
        %555 = vmatprep.subr.bf16.mxu0 0
        %556 = vmatpush1.bf16.msra.mxu0 %v439
        %557 = vmatprep.subr.bf16.mxu0 0
        %558 = vmatpush1.bf16.msra.mxu0 %v454
        %559 = vmatprep.subr.bf16.mxu0 0
        %560 = vmatpush1.bf16.msra.mxu0 %v469
        %561 = vmatprep.subr.bf16.mxu0 0
        %562 = vmatpush1.bf16.msra.mxu0 0
        %563 = vmatprep.subr.bf16.mxu0 0
        %564 = vmatpush1.bf16.msra.mxu0 0
        %565 = vmatprep.subr.bf16.mxu0 0
        %566 = vmatpush1.bf16.msra.mxu0 0
        %567 = vmatprep.subr.bf16.mxu0 0
        %568 = vmatpush1.bf16.msra.mxu0 0
        %569 = vmatprep.subr.bf16.mxu0 0
        %570 = vmatpush1.bf16.msra.mxu0 0
        %571 = vmatprep.subr.bf16.mxu0 0
        %572 = vmatpush1.bf16.msra.mxu0 0
        %573 = vmatprep.subr.bf16.mxu0 0
        %574 = vmatpush1.bf16.msra.mxu0 0
        %575 = vmatprep.mubr.bf16.mxu0 %v498
        %576 = vmatmul.mubr.bf16.gmra.mrb[0].mxu0 %v493
        %v577 = vpop.f32.mrb[0].mxu0
        %v578 = vadd.f32 %v480, %v577
        %v579 = vpop.f32.mrb[0].mxu0
        %v580 = vpop.f32.mrb[0].mxu0
        %v581 = vadd.f32 %v485, %v580
        %v582 = vpop.f32.mrb[0].mxu0
        %583 = vdwg.mxu0
        %v584 = vmax.f32 %v535, 0.0
        %v585 = vmax.f32 %v537, 0.0
        %v586 = vmax.f32 %v578, 0.0
        %v587 = vmax.f32 %v539, 0.0
        %v588 = vmax.f32 %v541, 0.0
        %v589 = vmax.f32 %v581, 0.0
        %590 = vst [vmem:[%s323] sm:$0xff] %v584
        %591 = vst [vmem:[%s323 + $0x8] sm:$0xff] %v585
        %592 = vst [vmem:[%s323 + $0x10] sm:$0xff] %v586
        %593 = vst [vmem:[%s323 + $0x18] sm:$0xff] %v587
        %594 = vst [vmem:[%s323 + $0x20] sm:$0xff] %v588
        %595 = vst [vmem:[%s323 + $0x28] sm:$0xff] %v589
        %s596 = smul.u32 3, %s20
        %p597 = scmp.lt.s32.totalorder %s19, 1
        %s598 = scalar_select %p597, %s19, 1
        %p599 = scmp.lt.s32.totalorder %s596, 2
        %s600 = scalar_select %p599, %s596, 2
        %s601 = smul.addr %s598, 6
        %s602 = sadd.s32 %s600, %s601
        %s603 = smul.addr %s602, 8
        %s604 = scalar_lea.vmem %s4, %s603
        // Predicated region
        $region89: #{upsample_block_forward.1} parent=79 // pred_check
          %p605 = pneg %p147
        $region90: #{upsample_block_forward.1} parent=79 // pred_check_branch
          %607 = sbr.rel (%p605) target = $region92
        $region91: #{upsample_block_forward.1} parent=79 // pred_region
          %s608 = smul.u32 3, %s20
        $region92: #{upsample_block_forward.1} parent=79 // pred_fallthru
          _
      $region80: #{upsample_block_forward.1} parent=5 // pred_fallthru
        _
      %p609 = scmp.le.s32.totalorder 2, %s10
      // Predicated region
      $region93: #{upsample_block_forward.1} parent=5 // pred_check
        %p610 = pneg %p609
      $region94: #{upsample_block_forward.1} parent=5 // pred_check_branch
        %612 = sbr.rel (%p610) target = $region96
      $region95: #{upsample_block_forward.1} parent=5 // pred_region
        %s613 = ssub.s32 %s10, 2
        // Predicated region
        $region97: #{upsample_block_forward.1} parent=95 // pred_check
          %p614 = pneg %p153
        $region98: #{upsample_block_forward.1} parent=95 // pred_check_branch
          %616 = sbr.rel (%p614) target = $region100
        $region99: #{upsample_block_forward.1} parent=95 // pred_region
          %s617 = smul.u32 3, %s22
          %p618 = scmp.lt.s32.totalorder %s21, 1
          %s619 = scalar_select %p618, %s21, 1
          %p620 = scmp.lt.s32.totalorder %s617, 2
          %s621 = scalar_select %p620, %s617, 2
          %s622 = smul.addr %s619, 6
          %s623 = sadd.s32 %s621, %s622
          %s624 = smul.addr %s623, 8
          %s625 = scalar_lea.vmem %s4, %s624
        $region100: #{upsample_block_forward.1} parent=95 // pred_fallthru
          _
      $region96: #{upsample_block_forward.1} parent=5 // pred_fallthru
        _
    $region6: #{upsample_block_forward.1} parent=1 // loop_footer
      %s14 = sadd.s32 1, %s10
    $region7: #{upsample_block_forward.1} parent=1 // loop_footer_branch
      %9 = sbr.rel target = $region3
    $region8: #{upsample_block_forward.1} parent=1 // loop_exit
      _

</llo_original>
